<compile_context>
chip_gen: v7x
topology: tpu7x:2x2x1
jax: 0.10.0
libtpu: 0.0.40
codegen_flags: <defaults>
</compile_context>

<pallas_src>
import jax
import jax.numpy as jnp
from jax.experimental import pallas as pl
from jax.experimental.pallas import tpu as pltpu


def _round_up(x: int, m: int) -> int:
    return (x + m - 1) // m * m


# --------------------------------------------------------------------------- #
# Kernel
# --------------------------------------------------------------------------- #
def encoder_kernel(ids_ref, tstack_ref, b_ref, o_ref):
    # ids_ref:    (TM, 3) int32 — per-row gather indices into the K-stacked
    #             fused table; tap-k column already offset by k*V_p.
    # tstack_ref: (3*V_p, D_out_p) bf16 — fused (embedding @ conv-tap) tables
    #             stacked along K; rows k*V_p+ZERO_ID are all-zero (conv pad).
    # b_ref:      (1, D_out_p) f32 conv bias.
    # o_ref:      (TM, D_out_p) output tile (f32 or bf16).
    tm = o_ref.shape[0]
    kdim = tstack_ref.shape[0]                                # 3 * V_p
    lane = jax.lax.broadcasted_iota(jnp.int32, (tm, kdim), 1)

    # Single (TM, 3*V_p) "three-hot" mask.  The three id columns live in
    # disjoint k*V_p lane segments, so a plain OR is exact.  Direct bool->bf16
    # cast: no f32 select intermediate, minimal VPU work.
    hit = ((lane == ids_ref[:, 0:1]) |
           (lane == ids_ref[:, 1:2]) |
           (lane == ids_ref[:, 2:3]))
    onehot = hit.astype(jnp.bfloat16)

    # ONE MXU matmul per tile replaces {embedding gather + 3 conv-tap matmuls};
    # accumulation is f32.
    acc = jnp.dot(onehot, tstack_ref[...], preferred_element_type=jnp.float32)
    acc = acc + b_ref[...]                                    # f32 bias epilogue
    o_ref[...] = jnp.maximum(acc, 0.0).astype(o_ref.dtype)    # ReLU, lane-dense store


# --------------------------------------------------------------------------- #
# Wrapper-side parameter / id preparation (one-time XLA work)
# --------------------------------------------------------------------------- #
def build_fused_params(emb_table, conv_w, conv_b):
    """Fold the embedding table into the 3 conv taps; pad & stack along K (bf16)."""
    vocab, d_in = emb_table.shape
    d_out = conv_w.shape[0]
    LANE = 128
    v_p = _round_up(vocab + 1, LANE)          # +1 guarantees a zero sentinel row
    d_out_p = _round_up(d_out, LANE)
    zero_id = vocab                           # zero fused row == Conv1d zero pad

    tab = jnp.zeros((v_p, d_in), jnp.float32).at[:vocab].set(emb_table.astype(jnp.float32))
    w_k = jnp.transpose(conv_w.astype(jnp.float32), (2, 1, 0))            # (3, D_in, D_out)
    fused = jnp.einsum('vd,kdo->kvo', tab, w_k,
                       precision=jax.lax.Precision.HIGHEST)               # (3, V_p, D_out)
    tstack = jnp.zeros((3, v_p, d_out_p), jnp.float32)
    tstack = tstack.at[:, :, :d_out].set(fused)
    tstack = tstack.reshape(3 * v_p, d_out_p).astype(jnp.bfloat16)        # (3*V_p, D_out_p)

    bias = jnp.zeros((1, d_out_p), jnp.float32).at[0, :d_out].set(conv_b.astype(jnp.float32))
    return tstack, bias, v_p, d_out_p, zero_id


def _stacked_ids(x_ids, v_p, zero_id, m_pad):
    """(M_pad, 3) int32: [x[t-1], x[t], x[t+1]] ids, offset by k*V_p per tap."""
    B, T = x_ids.shape
    ids = x_ids.astype(jnp.int32)
    zc = jnp.full((B, 1), zero_id, jnp.int32)
    ids_prev = jnp.concatenate([zc, ids[:, :-1]], axis=1)     # x[t-1]  (tap k=0)
    ids_next = jnp.concatenate([ids[:, 1:], zc], axis=1)      # x[t+1]  (tap k=2)
    stk = jnp.stack([ids_prev.reshape(-1), ids.reshape(-1), ids_next.reshape(-1)], axis=1)
    stk = jnp.pad(stk, ((0, m_pad - B * T), (0, 0)), constant_values=zero_id)
    return stk + jnp.arange(3, dtype=jnp.int32)[None, :] * v_p


# --------------------------------------------------------------------------- #
# Forward
# --------------------------------------------------------------------------- #
def encoder_forward(x_ids, emb_table, conv_w, conv_b, *, row_tile=512,
                    out_dtype=jnp.float32):
    """Encoder.forward.

    x_ids:     (B, T) int token ids
    emb_table: (vocab, D_in) f32 embedding weight (padding_idx row zeroed)
    conv_w:    (D_out, D_in, 3) f32 Conv1d weight (PyTorch layout)
    conv_b:    (D_out,) f32
    returns    (B, T, D_out) in `out_dtype` (f32 = exact module semantics,
               bf16 = writeback-optimized for v6e/v7x consumers).
    """
    B, T = x_ids.shape
    d_out = conv_w.shape[0]

    tstack, bias, v_p, d_out_p, zero_id = build_fused_params(emb_table, conv_w, conv_b)

    # Fold B*T into the matmul M dimension; 16-row multiples keep bf16 stores tiled.
    M = B * T
    tm = min(row_tile, _round_up(M, 16))
    m_pad = _round_up(M, tm)
    grid = (m_pad // tm,)

    id_stack = _stacked_ids(x_ids, v_p, zero_id, m_pad)       # (M_pad, 3) int32

    out_flat = pl.pallas_call(
        encoder_kernel,
        out_shape=jax.ShapeDtypeStruct((m_pad, d_out_p), out_dtype),
        grid_spec=pltpu.PrefetchScalarGridSpec(
            num_scalar_prefetch=0,
            grid=grid,
            in_specs=[
                pl.BlockSpec((tm, 3), lambda i: (i, 0)),              # ids, single stream
                # Resident operands (constant index maps).  For large vocab on
                # v7x (64 MiB VMEM/TC): pipeline_mode=pl.Buffered(1) and/or a
                # scalar-prefetched DMA row gather instead of a resident table.
                pl.BlockSpec((3 * v_p, d_out_p), lambda i: (0, 0)),   # fused K-stacked tables
                pl.BlockSpec((1, d_out_p), lambda i: (0, 0)),         # bias
            ],
            out_specs=pl.BlockSpec((tm, d_out_p), lambda i: (i, 0)),  # lane-dense store
        ),
        compiler_params=pltpu.CompilerParams(
            dimension_semantics=("parallel",),       # shard row tiles across TCs (v7x)
            vmem_limit_bytes=32 * 1024 * 1024,       # one budget that fits v5e/v6e/v7x
        ),
    )(id_stack, tstack, bias)

    # TODO(synk): in production feed the padded (M_pad, D_out_p) slab straight to
    # the next layer; this slice re-materializes a full-size copy in HBM.
    return out_flat[:M, :d_out].reshape(B, T, d_out)


# --------------------------------------------------------------------------- #
# References
# --------------------------------------------------------------------------- #
def encoder_reference(x_ids, emb_table, conv_w, conv_b):
    """Plain-JAX f32 reference matching the PyTorch forward exactly."""
    emb = jnp.take(emb_table, x_ids, axis=0)                  # (B, T, D)
    xpad = jnp.pad(emb, ((0, 0), (1, 1), (0, 0)))             # (B, T+2, D)
    T = x_ids.shape[1]
    hp = jax.lax.Precision.HIGHEST
    out = (jnp.einsum('btd,od->bto', xpad[:, 0:T], conv_w[:, :, 0], precision=hp)
           + jnp.einsum('btd,od->bto', xpad[:, 1:T + 1], conv_w[:, :, 1], precision=hp)
           + jnp.einsum('btd,od->bto', xpad[:, 2:T + 2], conv_w[:, :, 2], precision=hp)
           + conv_b[None, None, :])
    return jnp.maximum(out, 0.0)


def fused_gather_reference(x_ids, emb_table, conv_w, conv_b):
    """Plain-JAX gather over the SAME bf16 fused tables the kernel uses (tight check)."""
    B, T = x_ids.shape
    d_out = conv_w.shape[0]
    tstack, bias, v_p, d_out_p, zero_id = build_fused_params(emb_table, conv_w, conv_b)
    ids3 = _stacked_ids(x_ids, v_p, zero_id, B * T)           # (M, 3), offset per tap
    rows = jnp.take(tstack.astype(jnp.float32), ids3, axis=0)  # (M, 3, D_out_p)
    out = rows.sum(axis=1) + bias
    return jnp.maximum(out, 0.0)[:, :d_out].reshape(B, T, d_out)


# --------------------------------------------------------------------------- #
# Self-test
# --------------------------------------------------------------------------- #
if __name__ == "__main__":
    # Small ModelConfig-consistent shapes
    vocab_size = 32
    D_model = 32
    T_text = 8
    B = 2
    pad_idx = 0

    key = jax.random.PRNGKey(0)
    k_emb, k_w, k_b, k_ids = jax.random.split(key, 4)

    emb_table = jax.random.normal(k_emb, (vocab_size, D_model), jnp.float32)
    emb_table = emb_table.at[pad_idx].set(0.0)   # nn.Embedding padding_idx row is zero
    conv_w = 0.1 * jax.random.normal(k_w, (D_model, D_model, 3), jnp.float32)
    conv_b = 0.1 * jax.random.normal(k_b, (D_model,), jnp.float32)
    x_ids = jax.random.randint(k_ids, (B, T_text), 0, vocab_size, jnp.int32)

    # f32 output (module-exact semantics) and bf16 output (writeback-optimized).
    out = jax.block_until_ready(encoder_forward(x_ids, emb_table, conv_w, conv_b))
    out_bf16 = jax.block_until_ready(
        encoder_forward(x_ids, emb_table, conv_w, conv_b, out_dtype=jnp.bfloat16))

    assert out.shape == (B, T_text, D_model)
    assert out_bf16.shape == (B, T_text, D_model)

    # (1) End-to-end vs. the exact f32 PyTorch-equivalent forward; the only
    #     kernel-side approximation is one bf16 rounding of the fused tables
    #     (the MXU accumulates in f32).
    ref = encoder_reference(x_ids, emb_table, conv_w, conv_b)
    assert jnp.allclose(out, ref, atol=2e-2, rtol=2e-2)
    assert jnp.allclose(out_bf16.astype(jnp.float32), ref, atol=3e-2, rtol=3e-2)

    # (2) Tight check vs. a plain-JAX gather over the same bf16 fused tables —
    #     validates the in-kernel three-hot / K-stacking mechanics exactly.
    ref_fused = fused_gather_reference(x_ids, emb_table, conv_w, conv_b)
    assert jnp.allclose(out, ref_fused, atol=1e-4, rtol=1e-4)

    print("KERNEL_OK")
</pallas_src>

<mosaic_0001>
module attributes {stable_mosaic.version = 11 : i64} {
  func.func @encoder_kernel(%arg0: i32, %arg1: memref<16x3xi32, #tpu.memory_space<vmem>>, %arg2: memref<384x128xbf16, #tpu.memory_space<vmem>>, %arg3: memref<1x128xf32, #tpu.memory_space<vmem>>, %arg4: memref<16x128xf32, #tpu.memory_space<vmem>>) attributes {dimension_semantics = [#tpu.dimension_semantics<parallel>], iteration_bounds = array<i64: 1>, scalar_prefetch = 0 : i64, scratch_operands = 0 : i64, tpu.core_type = #tpu.core_type<tc>, window_params = [{transform_indices = @transform_0, window_bounds = array<i64: 16, 3>}, {pipeline_mode = #tpu.pipeline_mode<synchronous>, transform_indices = @transform_1, window_bounds = array<i64: 384, 128>}, {pipeline_mode = #tpu.pipeline_mode<synchronous>, transform_indices = @transform_2, window_bounds = array<i64: 1, 128>}, {transform_indices = @transform_3, window_bounds = array<i64: 16, 128>}]} {
    %0 = tpu.iota {dimensions = array<i32: 1>} : vector<16x384xi32>
    %c0 = arith.constant 0 : index
    %c0_0 = arith.constant 0 : index
    %1 = vector.load %arg1[%c0, %c0_0] : memref<16x3xi32, #tpu.memory_space<vmem>>, vector<16x1xi32>
    %2 = vector.broadcast %1 : vector<16x1xi32> to vector<16x384xi32>
    %3 = arith.cmpi eq, %0, %2 : vector<16x384xi32>
    %c0_1 = arith.constant 0 : index
    %c1 = arith.constant 1 : index
    %4 = vector.load %arg1[%c0_1, %c1] : memref<16x3xi32, #tpu.memory_space<vmem>>, vector<16x1xi32>
    %5 = vector.broadcast %4 : vector<16x1xi32> to vector<16x384xi32>
    %6 = arith.cmpi eq, %0, %5 : vector<16x384xi32>
    %7 = arith.ori %3, %6 : vector<16x384xi1>
    %c0_2 = arith.constant 0 : index
    %c2 = arith.constant 2 : index
    %8 = vector.load %arg1[%c0_2, %c2] : memref<16x3xi32, #tpu.memory_space<vmem>>, vector<16x1xi32>
    %9 = vector.broadcast %8 : vector<16x1xi32> to vector<16x384xi32>
    %10 = arith.cmpi eq, %0, %9 : vector<16x384xi32>
    %11 = arith.ori %7, %10 : vector<16x384xi1>
    %12 = arith.extui %11 : vector<16x384xi1> to vector<16x384xi32>
    %13 = arith.sitofp %12 : vector<16x384xi32> to vector<16x384xf32>
    %14 = arith.truncf %13 : vector<16x384xf32> to vector<16x384xbf16>
    %c0_3 = arith.constant 0 : index
    %c0_4 = arith.constant 0 : index
    %15 = vector.load %arg2[%c0_3, %c0_4] : memref<384x128xbf16, #tpu.memory_space<vmem>>, vector<384x128xbf16>
    %cst = arith.constant dense<0.000000e+00> : vector<16x128xf32>
    %16 = tpu.matmul %14, %15, %cst {dimension_numbers = #tpu.dot_dimension_numbers<[1], [0], [0], [1], [0, 0, 1, 1], [], []>} : vector<16x384xbf16>, vector<384x128xbf16>, vector<16x128xf32> -> vector<16x128xf32>
    %c0_5 = arith.constant 0 : index
    %c0_6 = arith.constant 0 : index
    %17 = vector.load %arg3[%c0_5, %c0_6] : memref<1x128xf32, #tpu.memory_space<vmem>>, vector<1x128xf32>
    %18 = vector.broadcast %17 : vector<1x128xf32> to vector<16x128xf32>
    %19 = arith.addf %16, %18 : vector<16x128xf32>
    %cst_7 = arith.constant 0.000000e+00 : f32
    %20 = vector.broadcast %cst_7 : f32 to vector<16x128xf32>
    %21 = arith.maximumf %19, %20 : vector<16x128xf32>
    %c0_8 = arith.constant 0 : index
    %c0_9 = arith.constant 0 : index
    %22 = vector.load %arg4[%c0_8, %c0_9] : memref<16x128xf32, #tpu.memory_space<vmem>>, vector<16x128xf32>
    tpu.vector_store %arg4[%c0_8, %c0_9], %21 {strides = array<i32>} : memref<16x128xf32, #tpu.memory_space<vmem>>, vector<16x128xf32>,
    return
  }
  func.func @transform_0(%arg0: i32) -> (i32, i32) {
    %c0_i32 = arith.constant 0 : i32
    %c0_i32_0 = arith.constant 0 : i32
    return %arg0, %c0_i32 : i32, i32
  }
  func.func @transform_1(%arg0: i32) -> (i32, i32) {
    %c0_i32 = arith.constant 0 : i32
    %c0_i32_0 = arith.constant 0 : i32
    %c0_i32_1 = arith.constant 0 : i32
    return %c0_i32, %c0_i32_0 : i32, i32
  }
  func.func @transform_2(%arg0: i32) -> (i32, i32) {
    %c0_i32 = arith.constant 0 : i32
    %c0_i32_0 = arith.constant 0 : i32
    %c0_i32_1 = arith.constant 0 : i32
    return %c0_i32, %c0_i32_0 : i32, i32
  }
  func.func @transform_3(%arg0: i32) -> (i32, i32) {
    %c0_i32 = arith.constant 0 : i32
    %c0_i32_0 = arith.constant 0 : i32
    return %arg0, %c0_i32 : i32, i32
  }
}

</mosaic_0001>

<llo_original>
// kernel: tpu_custom_call.1
$region0: #{tpu_custom_call.1}
  #allocation0 [shape = 'u32[]', space=smem, size = 0x4, offset = 0x4, fixed_abs, tag = 'smem constant byte address 0x4 - core index']
  #allocation1 [shape = 'u32[144,128]{1,0:T(1,128)}', space=vmem, size = 0x12000, scoped, tag = 'internal scratch']
  %s0 = inlined_call_operand.vmem [shape: s32[16,3], index: 0, kind: input, shape index: {}]
  %s1 = inlined_call_operand.hbm [shape: bf16[384,128], index: 1, kind: input, shape index: {}]
  %s2 = inlined_call_operand.vmem [shape: f32[1,128], index: 2, kind: input, shape index: {}]
  %s3 = inlined_call_operand.hbm [shape: f32[16,128], index: 3, kind: output, shape index: {}]
  %s4 = sld [smem:[#allocation0]]
  $region26: #{tpu_custom_call.1} parent=0
    _
  %s6 = ssub.s32 1, %s4
  %s7 = scalar_select 0, %s6, %s4
  $region1: #{tpu_custom_call.1} parent=0
    #allocation2 [shape = 'u8[98304]{0}', space=vmem, size = 0x18000, scoped, tag = 'input window, operand 1, single buffered']
    #allocation3 [shape = 's32[1]{0}', space=sflag, size = 0x4, scoped, tag = 'scoped memory for tpu_custom_call.1']
    #allocation4 [shape = 's32[1]{0}', space=sflag, size = 0x4, scoped, tag = 'scoped memory for tpu_custom_call.1']
    #allocation5 [shape = 'u8[8192]{0}', space=vmem, size = 0x2000, scoped, tag = 'output window, operand 0, single buffered']
    %8 = vsyncpa [#allocation3], 0
    %9 = vsyncpa [#allocation4], 0
    // Predicated region
    $region2: #{tpu_custom_call.1} parent=1 // pred_check
      _
    $region3: #{tpu_custom_call.1} parent=1 // pred_check_branch
      %11 = sbr.rel (0) target = $region5
    $region4: #{tpu_custom_call.1} parent=1 // pred_region
      _
    $region5: #{tpu_custom_call.1} parent=1 // pred_fallthru
      _
    // Predicated region
    $region6: #{tpu_custom_call.1} parent=1 // pred_check
      _
    $region7: #{tpu_custom_call.1} parent=1 // pred_check_branch
      %13 = sbr.rel (0) target = $region9
    $region8: #{tpu_custom_call.1} parent=1 // pred_region
      %s15 = ssub.s32 3072, 3072
      %16 = vsyncadd [#allocation3], %s15
      %s17 = sshll.u32 [#allocation2], 4
      %s18 = int_to_ptr.vmem [resolvable:$true] %s17
      %23 = dma.hbm_to_vmem [thread:$0]  %s1, 3072, %s18, [#allocation3], 64, 64, 4
    $region9: #{tpu_custom_call.1} parent=1 // pred_fallthru
      _
    // Predicated region
    $region10: #{tpu_custom_call.1} parent=1 // pred_check
      _
    $region11: #{tpu_custom_call.1} parent=1 // pred_check_branch
      %25 = sbr.rel (0) target = $region13
    $region12: #{tpu_custom_call.1} parent=1 // pred_region
      _
    $region13: #{tpu_custom_call.1} parent=1 // pred_fallthru
      _
    // Predicated region
    $region14: #{tpu_custom_call.1} parent=1 // pred_check
      _
    $region15: #{tpu_custom_call.1} parent=1 // pred_check_branch
      %27 = sbr.rel (0) target = $region17
    $region16: #{tpu_custom_call.1} parent=1 // pred_region
      %28 = dma.done [#allocation3], 3072
    $region17: #{tpu_custom_call.1} parent=1 // pred_fallthru
      _
    %v30 = vlaneseq
    %v31 = vand.u32 %v30, 127
    %v32 = vadd.s32 %v31, 128
    %v33 = vadd.s32 %v31, 256
    %v34 = vld [vmem:[%s0] sm:$0xff]
    %v35 = vld [vmem:[%s0 + $0x8] sm:$0xff]
    %36 = vset.pattern.permute.xlu0 0
    %37 = vperm.xlu0 %36, %v34
    %v38 = vpop.permute.xlu0 %37
    %39 = vset.pattern.permute.xlu0 0
    %40 = vperm.xlu0 %39, %v35
    %v41 = vpop.permute.xlu0 %40
    %vm42 = vcmp.eq.s32.totalorder %v31, %v38
    %vm43 = vcmp.eq.s32.totalorder %v32, %v38
    %vm44 = vcmp.eq.s32.totalorder %v33, %v38
    %vm45 = vcmp.eq.s32.totalorder %v31, %v41
    %vm46 = vcmp.eq.s32.totalorder %v32, %v41
    %vm47 = vcmp.eq.s32.totalorder %v33, %v41
    %48 = vset.pattern.permute.xlu0 1
    %49 = vperm.xlu0 %48, %v34
    %v50 = vpop.permute.xlu0 %49
    %51 = vset.pattern.permute.xlu0 1
    %52 = vperm.xlu0 %51, %v35
    %v53 = vpop.permute.xlu0 %52
    %vm54 = vcmp.eq.s32.totalorder %v31, %v50
    %vm55 = vcmp.eq.s32.totalorder %v32, %v50
    %vm56 = vcmp.eq.s32.totalorder %v33, %v50
    %vm57 = vcmp.eq.s32.totalorder %v31, %v53
    %vm58 = vcmp.eq.s32.totalorder %v32, %v53
    %vm59 = vcmp.eq.s32.totalorder %v33, %v53
    %vm60 = vmor %vm42, %vm54
    %vm61 = vmor %vm43, %vm55
    %vm62 = vmor %vm44, %vm56
    %vm63 = vmor %vm45, %vm57
    %vm64 = vmor %vm46, %vm58
    %vm65 = vmor %vm47, %vm59
    %66 = vset.pattern.permute.xlu0 2
    %67 = vperm.xlu0 %66, %v34
    %v68 = vpop.permute.xlu0 %67
    %69 = vset.pattern.permute.xlu0 2
    %70 = vperm.xlu0 %69, %v35
    %v71 = vpop.permute.xlu0 %70
    %vm72 = vcmp.eq.s32.totalorder %v31, %v68
    %vm73 = vcmp.eq.s32.totalorder %v32, %v68
    %vm74 = vcmp.eq.s32.totalorder %v33, %v68
    %vm75 = vcmp.eq.s32.totalorder %v31, %v71
    %vm76 = vcmp.eq.s32.totalorder %v32, %v71
    %vm77 = vcmp.eq.s32.totalorder %v33, %v71
    %vm78 = vmor %vm60, %vm72
    %vm79 = vmor %vm61, %vm73
    %vm80 = vmor %vm62, %vm74
    %vm81 = vmor %vm63, %vm75
    %vm82 = vmor %vm64, %vm76
    %vm83 = vmor %vm65, %vm77
    %v84 = vsel %vm78, 1, 0
    %v85 = vsel %vm79, 1, 0
    %v86 = vsel %vm80, 1, 0
    %v87 = vsel %vm81, 1, 0
    %v88 = vsel %vm82, 1, 0
    %v89 = vsel %vm83, 1, 0
    %v90 = vcvt.s32.f32 %v84
    %v91 = vcvt.s32.f32 %v85
    %v92 = vcvt.s32.f32 %v86
    %v93 = vcvt.s32.f32 %v87
    %v94 = vcvt.s32.f32 %v88
    %v95 = vcvt.s32.f32 %v89
    %v96 = vpack.c.bf16 %v93, %v90
    %v97 = vpack.c.bf16 %v94, %v91
    %v98 = vpack.c.bf16 %v95, %v92
    %v99 = vld [vmem:[#allocation2] sm:$0xf]
    %v100 = vld [vmem:[#allocation2 + $0x4] sm:$0xf]
    %v101 = vld [vmem:[#allocation2 + $0x8] sm:$0xf]
    %v102 = vld [vmem:[#allocation2 + $0xc] sm:$0xf]
    %v103 = vld [vmem:[#allocation2 + $0x10] sm:$0xf]
    %v104 = vld [vmem:[#allocation2 + $0x14] sm:$0xf]
    %v105 = vld [vmem:[#allocation2 + $0x18] sm:$0xf]
    %v106 = vld [vmem:[#allocation2 + $0x1c] sm:$0xf]
    %v107 = vld [vmem:[#allocation2 + $0x20] sm:$0xf]
    %v108 = vld [vmem:[#allocation2 + $0x24] sm:$0xf]
    %v109 = vld [vmem:[#allocation2 + $0x28] sm:$0xf]
    %v110 = vld [vmem:[#allocation2 + $0x2c] sm:$0xf]
    %v111 = vld [vmem:[#allocation2 + $0x30] sm:$0xf]
    %v112 = vld [vmem:[#allocation2 + $0x34] sm:$0xf]
    %v113 = vld [vmem:[#allocation2 + $0x38] sm:$0xf]
    %v114 = vld [vmem:[#allocation2 + $0x3c] sm:$0xf]
    %v115 = vld [vmem:[#allocation2 + $0x40] sm:$0xf]
    %v116 = vld [vmem:[#allocation2 + $0x44] sm:$0xf]
    %v117 = vld [vmem:[#allocation2 + $0x48] sm:$0xf]
    %v118 = vld [vmem:[#allocation2 + $0x4c] sm:$0xf]
    %v119 = vld [vmem:[#allocation2 + $0x50] sm:$0xf]
    %v120 = vld [vmem:[#allocation2 + $0x54] sm:$0xf]
    %v121 = vld [vmem:[#allocation2 + $0x58] sm:$0xf]
    %v122 = vld [vmem:[#allocation2 + $0x5c] sm:$0xf]
    %v123 = vld [vmem:[#allocation2 + $0x60] sm:$0xf]
    %v124 = vld [vmem:[#allocation2 + $0x64] sm:$0xf]
    %v125 = vld [vmem:[#allocation2 + $0x68] sm:$0xf]
    %v126 = vld [vmem:[#allocation2 + $0x6c] sm:$0xf]
    %v127 = vld [vmem:[#allocation2 + $0x70] sm:$0xf]
    %v128 = vld [vmem:[#allocation2 + $0x74] sm:$0xf]
    %v129 = vld [vmem:[#allocation2 + $0x78] sm:$0xf]
    %v130 = vld [vmem:[#allocation2 + $0x7c] sm:$0xf]
    %v131 = vld [vmem:[#allocation2 + $0x80] sm:$0xf]
    %v132 = vld [vmem:[#allocation2 + $0x84] sm:$0xf]
    %v133 = vld [vmem:[#allocation2 + $0x88] sm:$0xf]
    %v134 = vld [vmem:[#allocation2 + $0x8c] sm:$0xf]
    %v135 = vld [vmem:[#allocation2 + $0x90] sm:$0xf]
    %v136 = vld [vmem:[#allocation2 + $0x94] sm:$0xf]
    %v137 = vld [vmem:[#allocation2 + $0x98] sm:$0xf]
    %v138 = vld [vmem:[#allocation2 + $0x9c] sm:$0xf]
    %v139 = vld [vmem:[#allocation2 + $0xa0] sm:$0xf]
    %v140 = vld [vmem:[#allocation2 + $0xa4] sm:$0xf]
    %v141 = vld [vmem:[#allocation2 + $0xa8] sm:$0xf]
    %v142 = vld [vmem:[#allocation2 + $0xac] sm:$0xf]
    %v143 = vld [vmem:[#allocation2 + $0xb0] sm:$0xf]
    %v144 = vld [vmem:[#allocation2 + $0xb4] sm:$0xf]
    %v145 = vld [vmem:[#allocation2 + $0xb8] sm:$0xf]
    %v146 = vld [vmem:[#allocation2 + $0xbc] sm:$0xf]
    %v147 = vld [vmem:[%s2] sm:$0x1]
    %v149 = vlaneseq
    %v150 = vshrl.u32 %v149, 7
    %v151 = vsub.s32 0, %v150
    %v152 = vrot.slane %v147, %v151
    %v202 = vunpack.c.l.b16 %v99
    %v203 = vunpack.c.l.b16 %v100
    %v204 = vunpack.c.l.b16 %v101
    %v205 = vunpack.c.l.b16 %v102
    %v206 = vunpack.c.l.b16 %v103
    %v207 = vunpack.c.l.b16 %v104
    %v208 = vunpack.c.l.b16 %v105
    %v209 = vunpack.c.l.b16 %v106
    %v210 = vunpack.c.l.b16 %v107
    %v211 = vunpack.c.l.b16 %v108
    %v212 = vunpack.c.l.b16 %v109
    %v213 = vunpack.c.l.b16 %v110
    %v214 = vunpack.c.l.b16 %v111
    %v215 = vunpack.c.l.b16 %v112
    %v216 = vunpack.c.l.b16 %v113
    %v217 = vunpack.c.l.b16 %v114
    %v218 = vunpack.c.l.b16 %v115
    %v219 = vunpack.c.l.b16 %v116
    %v220 = vunpack.c.l.b16 %v117
    %v221 = vunpack.c.l.b16 %v118
    %v222 = vunpack.c.l.b16 %v119
    %v223 = vunpack.c.l.b16 %v120
    %v224 = vunpack.c.l.b16 %v121
    %v225 = vunpack.c.l.b16 %v122
    %v226 = vunpack.c.l.b16 %v123
    %v227 = vunpack.c.l.b16 %v124
    %v228 = vunpack.c.l.b16 %v125
    %v229 = vunpack.c.l.b16 %v126
    %v230 = vunpack.c.l.b16 %v127
    %v231 = vunpack.c.l.b16 %v128
    %v232 = vunpack.c.l.b16 %v129
    %v233 = vunpack.c.l.b16 %v130
    %v234 = vunpack.c.l.b16 %v131
    %v235 = vunpack.c.l.b16 %v132
    %v236 = vunpack.c.l.b16 %v133
    %v237 = vunpack.c.l.b16 %v134
    %v238 = vunpack.c.l.b16 %v135
    %v239 = vunpack.c.l.b16 %v136
    %v240 = vunpack.c.l.b16 %v137
    %v241 = vunpack.c.l.b16 %v138
    %v242 = vunpack.c.l.b16 %v139
    %v243 = vunpack.c.l.b16 %v140
    %v244 = vunpack.c.l.b16 %v141
    %v245 = vunpack.c.l.b16 %v142
    %v246 = vunpack.c.l.b16 %v143
    %v247 = vunpack.c.l.b16 %v144
    %v248 = vunpack.c.l.b16 %v145
    %v249 = vunpack.c.l.b16 %v146
    %v250 = vpack.c.b16 %v203, %v202
    %v251 = vpack.c.b16 %v205, %v204
    %v252 = vpack.c.b16 %v207, %v206
    %v253 = vpack.c.b16 %v209, %v208
    %v254 = vpack.c.b16 %v211, %v210
    %v255 = vpack.c.b16 %v213, %v212
    %v256 = vpack.c.b16 %v215, %v214
    %v257 = vpack.c.b16 %v217, %v216
    %v258 = vpack.c.b16 %v219, %v218
    %v259 = vpack.c.b16 %v221, %v220
    %v260 = vpack.c.b16 %v223, %v222
    %v261 = vpack.c.b16 %v225, %v224
    %v262 = vpack.c.b16 %v227, %v226
    %v263 = vpack.c.b16 %v229, %v228
    %v264 = vpack.c.b16 %v231, %v230
    %v265 = vpack.c.b16 %v233, %v232
    %v266 = vpack.c.b16 %v235, %v234
    %v267 = vpack.c.b16 %v237, %v236
    %v268 = vpack.c.b16 %v239, %v238
    %v269 = vpack.c.b16 %v241, %v240
    %v270 = vpack.c.b16 %v243, %v242
    %v271 = vpack.c.b16 %v245, %v244
    %v272 = vpack.c.b16 %v247, %v246
    %v273 = vpack.c.b16 %v249, %v248
    %298 = vmatprep.subr.bf16.mxu0 0
    %299 = vmatpush1.bf16.msra.mxu0 %v250
    %300 = vmatprep.subr.bf16.mxu0 0
    %301 = vmatpush1.bf16.msra.mxu0 %v251
    %302 = vmatprep.subr.bf16.mxu0 0
    %303 = vmatpush1.bf16.msra.mxu0 %v252
    %304 = vmatprep.subr.bf16.mxu0 0
    %305 = vmatpush1.bf16.msra.mxu0 %v253
    %306 = vmatprep.subr.bf16.mxu0 0
    %307 = vmatpush1.bf16.msra.mxu0 %v254
    %308 = vmatprep.subr.bf16.mxu0 0
    %309 = vmatpush1.bf16.msra.mxu0 %v255
    %310 = vmatprep.subr.bf16.mxu0 0
    %311 = vmatpush1.bf16.msra.mxu0 %v256
    %312 = vmatprep.subr.bf16.mxu0 0
    %313 = vmatpush1.bf16.msra.mxu0 %v257
    %314 = vmatprep.subr.bf16.mxu0 0
    %315 = vmatpush1.bf16.msra.mxu0 %v258
    %316 = vmatprep.subr.bf16.mxu0 0
    %317 = vmatpush1.bf16.msra.mxu0 %v259
    %318 = vmatprep.subr.bf16.mxu0 0
    %319 = vmatpush1.bf16.msra.mxu0 %v260
    %320 = vmatprep.subr.bf16.mxu0 0
    %321 = vmatpush1.bf16.msra.mxu0 %v261
    %322 = vmatprep.subr.bf16.mxu0 0
    %323 = vmatpush1.bf16.msra.mxu0 %v262
    %324 = vmatprep.subr.bf16.mxu0 0
    %325 = vmatpush1.bf16.msra.mxu0 %v263
    %326 = vmatprep.subr.bf16.mxu0 0
    %327 = vmatpush1.bf16.msra.mxu0 %v264
    %328 = vmatprep.subr.bf16.mxu0 0
    %329 = vmatpush1.bf16.msra.mxu0 %v265
    %330 = vmatprep.mubr.bf16.mxu0 %v97
    %331 = vmatmul.mubr.bf16.gmra.mrb[0].mxu0 %v96
    %v332 = vpop.f32.mrb[0].mxu0
    %v333 = vadd.f32 %v152, %v332
    %v334 = vpop.f32.mrb[0].mxu0
    %v335 = vpop.f32.mrb[0].mxu0
    %v336 = vadd.f32 %v152, %v335
    %v337 = vpop.f32.mrb[0].mxu0
    %338 = vdwg.mxu0
    %339 = vmatprep.subr.bf16.mxu0 0
    %340 = vmatpush1.bf16.msra.mxu0 %v266
    %341 = vmatprep.subr.bf16.mxu0 0
    %342 = vmatpush1.bf16.msra.mxu0 %v267
    %343 = vmatprep.subr.bf16.mxu0 0
    %344 = vmatpush1.bf16.msra.mxu0 %v268
    %345 = vmatprep.subr.bf16.mxu0 0
    %346 = vmatpush1.bf16.msra.mxu0 %v269
    %347 = vmatprep.subr.bf16.mxu0 0
    %348 = vmatpush1.bf16.msra.mxu0 %v270
    %349 = vmatprep.subr.bf16.mxu0 0
    %350 = vmatpush1.bf16.msra.mxu0 %v271
    %351 = vmatprep.subr.bf16.mxu0 0
    %352 = vmatpush1.bf16.msra.mxu0 %v272
    %353 = vmatprep.subr.bf16.mxu0 0
    %354 = vmatpush1.bf16.msra.mxu0 %v273
    %355 = vmatprep.subr.bf16.mxu0 0
    %356 = vmatpush1.bf16.msra.mxu0 0
    %357 = vmatprep.subr.bf16.mxu0 0
    %358 = vmatpush1.bf16.msra.mxu0 0
    %359 = vmatprep.subr.bf16.mxu0 0
    %360 = vmatpush1.bf16.msra.mxu0 0
    %361 = vmatprep.subr.bf16.mxu0 0
    %362 = vmatpush1.bf16.msra.mxu0 0
    %363 = vmatprep.subr.bf16.mxu0 0
    %364 = vmatpush1.bf16.msra.mxu0 0
    %365 = vmatprep.subr.bf16.mxu0 0
    %366 = vmatpush1.bf16.msra.mxu0 0
    %367 = vmatprep.subr.bf16.mxu0 0
    %368 = vmatpush1.bf16.msra.mxu0 0
    %369 = vmatprep.subr.bf16.mxu0 0
    %370 = vmatpush1.bf16.msra.mxu0 0
    %371 = vmatprep.mubr.bf16.mxu0 0
    %372 = vmatmul.mubr.bf16.gmra.mrb[0].mxu0 %v98
    %v373 = vpop.f32.mrb[0].mxu0
    %v374 = vadd.f32 %v333, %v373
    %v375 = vpop.f32.mrb[0].mxu0
    %v376 = vpop.f32.mrb[0].mxu0
    %v377 = vadd.f32 %v336, %v376
    %v378 = vpop.f32.mrb[0].mxu0
    %379 = vdwg.mxu0
    %v380 = vmax.f32 %v374, 0.0
    %v381 = vmax.f32 %v377, 0.0
    %382 = vst [vmem:[#allocation5] sm:$0xff] %v380
    %383 = vst [vmem:[#allocation5 + $0x8] sm:$0xff] %v381
    // Predicated region
    $region18: #{tpu_custom_call.1} parent=1 // pred_check
      _
    $region19: #{tpu_custom_call.1} parent=1 // pred_check_branch
      %385 = sbr.rel (0) target = $region21
    $region20: #{tpu_custom_call.1} parent=1 // pred_region
      %s387 = ssub.s32 256, 256
      %388 = vsyncadd [#allocation4], %s387
      %s389 = sshll.u32 [#allocation5], 4
      %s390 = int_to_ptr.vmem [resolvable:$true] %s389
      %395 = dma.vmem_to_hbm [thread:$0]  %s390, 256, %s3, [#allocation4], 128, 128, 8
    $region21: #{tpu_custom_call.1} parent=1 // pred_fallthru
      _
    // Predicated region
    $region22: #{tpu_custom_call.1} parent=1 // pred_check
      _
    $region23: #{tpu_custom_call.1} parent=1 // pred_check_branch
      %397 = sbr.rel (0) target = $region25
    $region24: #{tpu_custom_call.1} parent=1 // pred_region
      %398 = dma.done [#allocation4], 256
    $region25: #{tpu_custom_call.1} parent=1 // pred_fallthru
      _
    %399 = vsyncpa [#allocation3], 1
    %400 = vsyncpa [#allocation4], 1

</llo_original>
